<compile_context>
chip_gen: v5e
topology: v5e:2x2
jax: 0.10.0
libtpu: 0.0.40
codegen_flags: <defaults>
</compile_context>

<pallas_src>
import functools

import jax
import jax.numpy as jnp
from jax.experimental import pallas as pl
from jax.experimental.pallas import tpu as pltpu


def _lambda_train_kernel(x_ref, w_ref, b_ref, eps_ref, out_ref, *, lp):
    # One fused projection on the MXU: [TB, H] @ [H, 2*Lp] -> [TB, 2*Lp]
    proj = jnp.dot(x_ref[...], w_ref[...],
                   preferred_element_type=jnp.float32) + b_ref[...]
    mean = proj[:, :lp]      # 128-aligned lane slice
    logvar = proj[:, lp:]    # 128-aligned lane slice
    # Reparameterization trick; VPU/EUP math in f32 (v5e has no bf16 VPU/EUP).
    z = eps_ref[...] * jnp.exp(0.5 * logvar) + mean
    # Single lane-dense output tile: [ mean | logvar | z ], 128-aligned stores.
    out_ref[:, :2 * lp] = proj
    out_ref[:, 2 * lp:] = z


def _lambda_eval_kernel(x_ref, w_ref, b_ref, out_ref):
    # Eval: only the fused projection; no eps, no exp, no z writeback.
    out_ref[...] = jnp.dot(x_ref[...], w_ref[...],
                           preferred_element_type=jnp.float32) + b_ref[...]


def lambda_forward(cell_output, w_mean, b_mean, w_logvar, b_logvar, eps=None,
                   *, training=True, block_batch=512, use_bf16_matmul=False):
    """Forward pass of the Lambda module.

    cell_output: [B, H] float
    w_mean / w_logvar: [H, L]  (i.e. torch `weight.T`)
    b_mean / b_logvar: [L]
    eps: [B, L] standard normal noise (training mode only)
    Returns (sample, latent_mean, latent_logvar); sample == latent_mean in eval.
    """
    B, H = cell_output.shape
    L = w_mean.shape[1]
    # Pad latent length up to a lane-dense multiple of 128 -> unmasked stores.
    Lp = ((L + 127) // 128) * 128

    f32 = jnp.float32
    mm_dtype = jnp.bfloat16 if use_bf16_matmul else f32

    # Fuse the two projections into one [H, 2*Lp] weight / [1, 2*Lp] bias.
    pad_l = Lp - L
    w_fused = jnp.concatenate(
        [jnp.pad(w_mean.astype(f32), ((0, 0), (0, pad_l))),
         jnp.pad(w_logvar.astype(f32), ((0, 0), (0, pad_l)))], axis=1)
    b_fused = jnp.concatenate(
        [jnp.pad(b_mean.astype(f32), (0, pad_l)),
         jnp.pad(b_logvar.astype(f32), (0, pad_l))])[None, :]

    # Batch tiling: biggest tile that stays small in VMEM.
    TB = min(block_batch, B)
    if TB < B:
        TB = max(8, (TB // 8) * 8)      # keep sublane-aligned tiles
    n_blocks = -(-B // TB)
    Bp = n_blocks * TB

    x = cell_output.astype(mm_dtype)
    w_mm = w_fused.astype(mm_dtype)
    if Bp != B:
        x = jnp.pad(x, ((0, Bp - B), (0, 0)))

    compiler_params = pltpu.CompilerParams(
        dimension_semantics=("parallel",))   # megacore-shard the batch axis

    if training:
        if eps is None:
            raise ValueError("training=True requires eps of shape [B, L]")
        eps_p = jnp.pad(eps.astype(f32), ((0, Bp - B), (0, pad_l)))
        out = pl.pallas_call(
            functools.partial(_lambda_train_kernel, lp=Lp),
            out_shape=jax.ShapeDtypeStruct((Bp, 3 * Lp), f32),
            grid=(n_blocks,),
            in_specs=[
                pl.BlockSpec((TB, H), lambda i: (i, 0)),       # x tile
                pl.BlockSpec((H, 2 * Lp), lambda i: (0, 0)),   # fused weight (resident)
                pl.BlockSpec((1, 2 * Lp), lambda i: (0, 0)),   # fused bias (resident)
                pl.BlockSpec((TB, Lp), lambda i: (i, 0)),      # eps tile
            ],
            out_specs=pl.BlockSpec((TB, 3 * Lp), lambda i: (i, 0)),
            compiler_params=compiler_params,
        )(x, w_mm, b_fused, eps_p)
        mean = out[:B, :L]
        logvar = out[:B, Lp:Lp + L]
        z = out[:B, 2 * Lp:2 * Lp + L]
        return z, mean, logvar

    # Eval path: fewer inputs/outputs, no transcendental work.
    out = pl.pallas_call(
        _lambda_eval_kernel,
        out_shape=jax.ShapeDtypeStruct((Bp, 2 * Lp), f32),
        grid=(n_blocks,),
        in_specs=[
            pl.BlockSpec((TB, H), lambda i: (i, 0)),
            pl.BlockSpec((H, 2 * Lp), lambda i: (0, 0)),
            pl.BlockSpec((1, 2 * Lp), lambda i: (0, 0)),
        ],
        out_specs=pl.BlockSpec((TB, 2 * Lp), lambda i: (i, 0)),
        compiler_params=compiler_params,
    )(x, w_mm, b_fused)
    mean = out[:B, :L]
    logvar = out[:B, Lp:Lp + L]
    return mean, mean, logvar


def xavier_uniform(key, fan_out, fan_in, dtype=jnp.float32):
    # Matches torch.nn.init.xavier_uniform_ for a [fan_out, fan_in] weight.
    limit = (6.0 / (fan_in + fan_out)) ** 0.5
    return jax.random.uniform(key, (fan_out, fan_in), dtype,
                              minval=-limit, maxval=limit)


if __name__ == "__main__":
    hidden_size = 32
    latent_length = 16
    batch = 8

    key = jax.random.PRNGKey(0)
    k_x, k_wm, k_bm, k_wl, k_bl, k_eps = jax.random.split(key, 6)

    # Parameters (synthetic init mirroring the module's __init__), torch layout [L, H].
    w_mean_t = xavier_uniform(k_wm, latent_length, hidden_size)
    w_logvar_t = xavier_uniform(k_wl, latent_length, hidden_size)
    b_lim = 1.0 / (hidden_size ** 0.5)
    b_mean = jax.random.uniform(k_bm, (latent_length,), jnp.float32, -b_lim, b_lim)
    b_logvar = jax.random.uniform(k_bl, (latent_length,), jnp.float32, -b_lim, b_lim)

    # Inputs.
    cell_output = jax.random.normal(k_x, (batch, hidden_size), jnp.float32)
    eps = jax.random.normal(k_eps, (batch, latent_length), jnp.float32)

    fwd_train = jax.jit(functools.partial(lambda_forward, training=True))
    fwd_eval = jax.jit(functools.partial(lambda_forward, training=False))

    # Training mode -> reparameterized sample.
    z, latent_mean, latent_logvar = fwd_train(
        cell_output, w_mean_t.T, b_mean, w_logvar_t.T, b_logvar, eps)
    # Eval mode -> mean only (no eps / exp / z path).
    mean_eval, _, logvar_eval = fwd_eval(
        cell_output, w_mean_t.T, b_mean, w_logvar_t.T, b_logvar)
    jax.block_until_ready((z, latent_mean, latent_logvar, mean_eval, logvar_eval))

    # Reference check in plain JAX.
    ref_mean = cell_output @ w_mean_t.T + b_mean
    ref_logvar = cell_output @ w_logvar_t.T + b_logvar
    ref_z = eps * jnp.exp(0.5 * ref_logvar) + ref_mean
    assert jnp.allclose(latent_mean, ref_mean, atol=1e-5, rtol=1e-5)
    assert jnp.allclose(latent_logvar, ref_logvar, atol=1e-5, rtol=1e-5)
    assert jnp.allclose(z, ref_z, atol=1e-5, rtol=1e-5)
    assert jnp.allclose(mean_eval, ref_mean, atol=1e-5, rtol=1e-5)
    assert jnp.allclose(logvar_eval, ref_logvar, atol=1e-5, rtol=1e-5)

    print("KERNEL_OK")
</pallas_src>

<mosaic_0001>
module attributes {stable_mosaic.version = 11 : i64} {
  func.func @_lambda_train_kernel(%arg0: i32, %arg1: memref<8x32xf32, #tpu.memory_space<vmem>>, %arg2: memref<32x256xf32, #tpu.memory_space<vmem>>, %arg3: memref<1x256xf32, #tpu.memory_space<vmem>>, %arg4: memref<8x128xf32, #tpu.memory_space<vmem>>, %arg5: memref<8x384xf32, #tpu.memory_space<vmem>>) attributes {dimension_semantics = [#tpu.dimension_semantics<parallel>], iteration_bounds = array<i64: 1>, scalar_prefetch = 0 : i64, scratch_operands = 0 : i64, tpu.core_type = #tpu.core_type<tc>, window_params = [{transform_indices = @transform_0, window_bounds = array<i64: 8, 32>}, {pipeline_mode = #tpu.pipeline_mode<synchronous>, transform_indices = @transform_1, window_bounds = array<i64: 32, 256>}, {pipeline_mode = #tpu.pipeline_mode<synchronous>, transform_indices = @transform_2, window_bounds = array<i64: 1, 256>}, {transform_indices = @transform_3, window_bounds = array<i64: 8, 128>}, {transform_indices = @transform_4, window_bounds = array<i64: 8, 384>}]} {
    %c0 = arith.constant 0 : index
    %c0_0 = arith.constant 0 : index
    %0 = vector.load %arg1[%c0, %c0_0] : memref<8x32xf32, #tpu.memory_space<vmem>>, vector<8x32xf32>
    %c0_1 = arith.constant 0 : index
    %c0_2 = arith.constant 0 : index
    %1 = vector.load %arg2[%c0_1, %c0_2] : memref<32x256xf32, #tpu.memory_space<vmem>>, vector<32x256xf32>
    %cst = arith.constant dense<0.000000e+00> : vector<8x256xf32>
    %2 = tpu.matmul %0, %1, %cst {dimension_numbers = #tpu.dot_dimension_numbers<[1], [0], [0], [1], [0, 0, 1, 1], [], []>} : vector<8x32xf32>, vector<32x256xf32>, vector<8x256xf32> -> vector<8x256xf32>
    %c0_3 = arith.constant 0 : index
    %c0_4 = arith.constant 0 : index
    %3 = vector.load %arg3[%c0_3, %c0_4] : memref<1x256xf32, #tpu.memory_space<vmem>>, vector<1x256xf32>
    %4 = vector.broadcast %3 : vector<1x256xf32> to vector<8x256xf32>
    %5 = arith.addf %2, %4 : vector<8x256xf32>
    %6 = vector.extract_strided_slice %5 {offsets = [0, 0], sizes = [8, 128], strides = [1, 1]} : vector<8x256xf32> to vector<8x128xf32>
    %7 = vector.extract_strided_slice %5 {offsets = [0, 128], sizes = [8, 128], strides = [1, 1]} : vector<8x256xf32> to vector<8x128xf32>
    %c0_5 = arith.constant 0 : index
    %c0_6 = arith.constant 0 : index
    %8 = vector.load %arg4[%c0_5, %c0_6] : memref<8x128xf32, #tpu.memory_space<vmem>>, vector<8x128xf32>
    %cst_7 = arith.constant 5.000000e-01 : f32
    %9 = vector.broadcast %cst_7 : f32 to vector<8x128xf32>
    %10 = arith.mulf %9, %7 : vector<8x128xf32>
    %11 = math.exp %10 : vector<8x128xf32>
    %12 = arith.mulf %8, %11 : vector<8x128xf32>
    %13 = arith.addf %12, %6 : vector<8x128xf32>
    %c0_8 = arith.constant 0 : index
    %c0_9 = arith.constant 0 : index
    %14 = vector.load %arg5[%c0_8, %c0_9] : memref<8x384xf32, #tpu.memory_space<vmem>>, vector<8x256xf32>
    tpu.vector_store %arg5[%c0_8, %c0_9], %5 {strides = array<i32>} : memref<8x384xf32, #tpu.memory_space<vmem>>, vector<8x256xf32>,
    %c0_10 = arith.constant 0 : index
    %c256 = arith.constant 256 : index
    %15 = vector.load %arg5[%c0_10, %c256] : memref<8x384xf32, #tpu.memory_space<vmem>>, vector<8x128xf32>
    tpu.vector_store %arg5[%c0_10, %c256], %13 {strides = array<i32>} : memref<8x384xf32, #tpu.memory_space<vmem>>, vector<8x128xf32>,
    return
  }
  func.func @transform_0(%arg0: i32) -> (i32, i32) {
    %c0_i32 = arith.constant 0 : i32
    %c0_i32_0 = arith.constant 0 : i32
    return %arg0, %c0_i32 : i32, i32
  }
  func.func @transform_1(%arg0: i32) -> (i32, i32) {
    %c0_i32 = arith.constant 0 : i32
    %c0_i32_0 = arith.constant 0 : i32
    %c0_i32_1 = arith.constant 0 : i32
    return %c0_i32, %c0_i32_0 : i32, i32
  }
  func.func @transform_2(%arg0: i32) -> (i32, i32) {
    %c0_i32 = arith.constant 0 : i32
    %c0_i32_0 = arith.constant 0 : i32
    %c0_i32_1 = arith.constant 0 : i32
    return %c0_i32, %c0_i32_0 : i32, i32
  }
  func.func @transform_3(%arg0: i32) -> (i32, i32) {
    %c0_i32 = arith.constant 0 : i32
    %c0_i32_0 = arith.constant 0 : i32
    return %arg0, %c0_i32 : i32, i32
  }
  func.func @transform_4(%arg0: i32) -> (i32, i32) {
    %c0_i32 = arith.constant 0 : i32
    %c0_i32_0 = arith.constant 0 : i32
    return %arg0, %c0_i32 : i32, i32
  }
}

</mosaic_0001>

<llo_original>
// kernel: lambda_forward.1
$region0: #{lambda_forward.1}
  #allocation0 [shape = 'u32[]', space=smem, size = 0x4, offset = 0x4, fixed_abs, tag = 'smem constant byte address 0x4 - core index']
  #allocation1 [shape = 'u32[72,128]{1,0:T(1,128)}', space=vmem, size = 0x9000, scoped, tag = 'internal scratch']
  %s0 = inlined_call_operand.vmem [shape: f32[8,32], index: 0, kind: input, shape index: {}]
  %s1 = inlined_call_operand.vmem [shape: f32[32,256], index: 1, kind: input, shape index: {}]
  %s2 = inlined_call_operand.vmem [shape: f32[1,256], index: 2, kind: input, shape index: {}]
  %s3 = inlined_call_operand.vmem [shape: f32[8,128], index: 3, kind: input, shape index: {}]
  %s4 = inlined_call_operand.vmem [shape: f32[8,384], index: 4, kind: output, shape index: {}]
  %s5 = sld [smem:[#allocation0]]
  $region26: #{lambda_forward.1} parent=0
    _
  %s7 = ssub.s32 1, %s5
  %s8 = scalar_select 0, %s7, %s5
  // Predicated region
  $region2: #{lambda_forward.1} parent=0 // pred_check
    _
  $region3: #{lambda_forward.1} parent=0 // pred_check_branch
    %10 = sbr.rel (0) target = $region5
  $region4: #{lambda_forward.1} parent=0 // pred_region
    _
  $region5: #{lambda_forward.1} parent=0 // pred_fallthru
    _
  // Predicated region
  $region6: #{lambda_forward.1} parent=0 // pred_check
    _
  $region7: #{lambda_forward.1} parent=0 // pred_check_branch
    %12 = sbr.rel (0) target = $region9
  $region8: #{lambda_forward.1} parent=0 // pred_region
    _
  $region9: #{lambda_forward.1} parent=0 // pred_fallthru
    _
  // Predicated region
  $region10: #{lambda_forward.1} parent=0 // pred_check
    _
  $region11: #{lambda_forward.1} parent=0 // pred_check_branch
    %14 = sbr.rel (0) target = $region13
  $region12: #{lambda_forward.1} parent=0 // pred_region
    _
  $region13: #{lambda_forward.1} parent=0 // pred_fallthru
    _
  // Predicated region
  $region14: #{lambda_forward.1} parent=0 // pred_check
    _
  $region15: #{lambda_forward.1} parent=0 // pred_check_branch
    %16 = sbr.rel (0) target = $region17
  $region16: #{lambda_forward.1} parent=0 // pred_region
    _
  $region17: #{lambda_forward.1} parent=0 // pred_fallthru
    _
  %v17 = vld [vmem:[%s0] sm:$0xff]
  %v18 = vld [vmem:[%s1] sm:$0xff]
  %v19 = vld [vmem:[%s1 + $0x8] sm:$0xff]
  %v20 = vld [vmem:[%s1 + $0x10] sm:$0xff]
  %v21 = vld [vmem:[%s1 + $0x18] sm:$0xff]
  %v22 = vld [vmem:[%s1 + $0x20] sm:$0xff]
  %v23 = vld [vmem:[%s1 + $0x28] sm:$0xff]
  %v24 = vld [vmem:[%s1 + $0x30] sm:$0xff]
  %v25 = vld [vmem:[%s1 + $0x38] sm:$0xff]
  %v26 = vld [vmem:[%s2] sm:$0x3]
  %v28 = vperm.slane %v26, 0
  %v29 = vperm.slane %v26, 1
  %vm32 = vcmask 261120
  %v34 = vsel %vm32, %v17, 0
  %36 = vmatpush.msra.mxu0 0.0
  %37 = vmatpush.msra.mxu0 0.0
  %38 = vmatpush.msra.mxu0 0.0
  %39 = vmatpush.msra.mxu0 0.0
  %40 = vmatpush.msra.mxu0 0.0
  %41 = vmatpush.msra.mxu0 0.0
  %42 = vmatpush.msra.mxu0 0.0
  %43 = vmatpush.msra.mxu0 0.0
  %44 = vmatpush.msra.mxu0 0.0
  %45 = vmatpush.msra.mxu0 0.0
  %46 = vmatpush.msra.mxu0 0.0
  %47 = vmatpush.msra.mxu0 0.0
  %48 = vmatpush.msra.mxu0 %v24
  %49 = vmatpush.msra.mxu0 %v22
  %50 = vmatpush.msra.mxu0 %v20
  %51 = vmatpush.msra.mxu0 %v18
  %52 = vmatmul.f32.gmra.mxu0 %v34
  %v53 = vpop.f32.mrf.mxu0
  %v54 = vadd.f32 %v28, %v53
  %55 = vdwg.mxu0
  %56 = vmatpush.msra.mxu0 0.0
  %57 = vmatpush.msra.mxu0 0.0
  %58 = vmatpush.msra.mxu0 0.0
  %59 = vmatpush.msra.mxu0 0.0
  %60 = vmatpush.msra.mxu0 0.0
  %61 = vmatpush.msra.mxu0 0.0
  %62 = vmatpush.msra.mxu0 0.0
  %63 = vmatpush.msra.mxu0 0.0
  %64 = vmatpush.msra.mxu0 0.0
  %65 = vmatpush.msra.mxu0 0.0
  %66 = vmatpush.msra.mxu0 0.0
  %67 = vmatpush.msra.mxu0 0.0
  %68 = vmatpush.msra.mxu0 %v25
  %69 = vmatpush.msra.mxu0 %v23
  %70 = vmatpush.msra.mxu0 %v21
  %71 = vmatpush.msra.mxu0 %v19
  %72 = vmatmul.f32.gmra.mxu0 %v34
  %v73 = vpop.f32.mrf.mxu0
  %v74 = vadd.f32 %v29, %v73
  %75 = vdwg.mxu0
  %v76 = vld [vmem:[%s3] sm:$0xff]
  %v77 = vmul.f32 %v74, 0.5
  %v78 = vmul.f32 %v77, 1.442695
  %v79 = vpow.pop %v78
  %v80 = vmul.f32 %v76, %v79
  %v81 = vadd.f32 %v80, %v54
  %82 = vst [vmem:[%s4] sm:$0xff] %v54
  %83 = vst [vmem:[%s4 + $0x8] sm:$0xff] %v74
  %84 = vst [vmem:[%s4 + $0x10] sm:$0xff] %v81
  // Predicated region
  $region18: #{lambda_forward.1} parent=0 // pred_check
    _
  $region19: #{lambda_forward.1} parent=0 // pred_check_branch
    %86 = sbr.rel (0) target = $region21
  $region20: #{lambda_forward.1} parent=0 // pred_region
    _
  $region21: #{lambda_forward.1} parent=0 // pred_fallthru
    _
  // Predicated region
  $region22: #{lambda_forward.1} parent=0 // pred_check
    _
  $region23: #{lambda_forward.1} parent=0 // pred_check_branch
    %88 = sbr.rel (0) target = $region25
  $region24: #{lambda_forward.1} parent=0 // pred_region
    _
  $region25: #{lambda_forward.1} parent=0 // pred_fallthru
    _

</llo_original>
